<compile_context>
chip_gen: v7x
topology: tpu7x:2x2x1
jax: 0.10.0
libtpu: 0.0.40
codegen_flags: <defaults>
</compile_context>

<pallas_src>
import math

import jax
import jax.numpy as jnp
from jax import lax
from jax.experimental import pallas as pl
from jax.experimental.pallas import tpu as pltpu

# ---------------- small synthetic config ----------------
B = 2            # batch
N_RES = 8        # residues
C_S = 32         # single-repr channels
C_Z = 16         # pair-repr channels
C_HID = 16       # per-head hidden
N_HEAD = 4
NO_QK_PTS = 4
NO_V_PTS = 8
NO_BLOCKS = 2
N_AATYPE = 21
EPS = 1e-8

HC = N_HEAD * C_HID                         # 64
HPQ = N_HEAD * NO_QK_PTS                    # 16
HPV = N_HEAD * NO_V_PTS                     # 32
D_PROJ = 3 * HC + 2 * 3 * HPQ + 3 * HPV     # 384  (lane-dense: 3 x 128)
D_CAT = HC + 3 * HPV + HPV + N_HEAD * C_Z   # 256

# column offsets into the fused q/k/v/point projection
_OFF_Q = 0
_OFF_K = HC
_OFF_V = 2 * HC
_OFF_QP = 3 * HC                            # 3 xyz planes of HPQ
_OFF_KP = _OFF_QP + 3 * HPQ
_OFF_VP = _OFF_KP + 3 * HPQ                 # 3 xyz planes of HPV

# explicit scoped-VMEM budget (safe on v5e/v6e/v7x); matters at realistic N_res
VMEM_LIMIT = 32 * 1024 * 1024


# ======================= small matmul helpers (MXU) =======================

def _bf16_dot(a, b):
    """a @ b with bf16 MXU operands and f32 accumulation."""
    return jnp.dot(a.astype(jnp.bfloat16), b.astype(jnp.bfloat16),
                   preferred_element_type=jnp.float32)


def _bf16_dot_t(a, b):
    """a @ b.T with bf16 MXU operands and f32 accumulation."""
    return lax.dot_general(a.astype(jnp.bfloat16), b.astype(jnp.bfloat16),
                           (((1,), (1,)), ((), ())),
                           preferred_element_type=jnp.float32)


def _dot_t_f32(a, b):
    """a @ b.T in f32 (tiny point-geometry cross terms)."""
    return lax.dot_general(a, b, (((1,), (1,)), ((), ())),
                           preferred_element_type=jnp.float32)


# ======================= generic row-tiled linear =======================

def _linear_kernel(x_ref, w_ref, b_ref, o_ref):
    o_ref[...] = _bf16_dot(x_ref[...], w_ref[...]) + b_ref[...]


def pallas_linear(x, w, b, max_rows=256):
    """x: [..., K] @ w: [K, F] + b, row-tiled over flattened leading dims."""
    lead = x.shape[:-1]
    K = x.shape[-1]
    F = w.shape[-1]
    x2 = x.reshape(-1, K)
    M = x2.shape[0]
    tm = M if (M <= max_rows or M % max_rows != 0) else max_rows
    out = pl.pallas_call(
        _linear_kernel,
        out_shape=jax.ShapeDtypeStruct((M, F), jnp.float32),
        grid=(M // tm,),
        in_specs=[pl.BlockSpec((tm, K), lambda i: (i, 0)),
                  pl.BlockSpec((K, F), lambda i: (0, 0)),
                  pl.BlockSpec((1, F), lambda i: (0, 0))],
        out_specs=pl.BlockSpec((tm, F), lambda i: (i, 0)),
        compiler_params=pltpu.CompilerParams(
            dimension_semantics=("parallel",),
            vmem_limit_bytes=VMEM_LIMIT),
    )(x2, w, b.reshape(1, F))
    return out.reshape(lead + (F,))


# ======================= fused IPA kernel =======================

def _ipa_fused_kernel(s_ref, wf_ref, bf_ref, ptsc_ref, bz_ref, mb_ref, z_ref,
                      rt_ref, wo_ref, bo_ref, out_ref):
    s = s_ref[0]                                      # (N, C_S)
    # one fused q/k/v + point projection for all heads: (N, 384), lane-dense
    proj = _bf16_dot(s, wf_ref[...]) + bf_ref[...]

    q = proj[:, _OFF_Q:_OFF_Q + HC]                   # q-scale folded into weight
    k = proj[:, _OFF_K:_OFF_K + HC]
    v = proj[:, _OFF_V:_OFF_V + HC]
    qp = [proj[:, _OFF_QP + c * HPQ:_OFF_QP + (c + 1) * HPQ] for c in range(3)]
    kp = [proj[:, _OFF_KP + c * HPQ:_OFF_KP + (c + 1) * HPQ] for c in range(3)]
    vp = [proj[:, _OFF_VP + c * HPV:_OFF_VP + (c + 1) * HPV] for c in range(3)]

    rt = rt_ref[0]                                    # (N, 12) = [R row-major | t]
    r = [rt[:, i:i + 1] for i in range(9)]            # r[3*i + j] = R[i, j]
    t = [rt[:, 9 + i:10 + i] for i in range(3)]

    def to_global(p):                                 # local -> global: R p + t
        return (r[0] * p[0] + r[1] * p[1] + r[2] * p[2] + t[0],
                r[3] * p[0] + r[4] * p[1] + r[5] * p[2] + t[1],
                r[6] * p[0] + r[7] * p[1] + r[8] * p[2] + t[2])

    ptsc = ptsc_ref[...]                              # (1, H*Pq) per-head sqrt scale
    qg = [c * ptsc for c in to_global(qp)]
    kg = [c * ptsc for c in to_global(kp)]
    vg = to_global(vp)

    mb = mb_ref[0]                                    # (1, N) additive mask bias
    zz = z_ref[0]                                     # (N, N, C_Z), bf16

    o_list, ox_list, oy_list, oz_list, a_list = [], [], [], [], []
    for h in range(N_HEAD):                           # static unroll over heads
        cs = slice(h * C_HID, (h + 1) * C_HID)
        ps = slice(h * NO_QK_PTS, (h + 1) * NO_QK_PTS)
        vs = slice(h * NO_V_PTS, (h + 1) * NO_V_PTS)

        att = _bf16_dot_t(q[:, cs], k[:, cs])         # scalar q.k term (N, N)

        qx, qy, qz = qg[0][:, ps], qg[1][:, ps], qg[2][:, ps]
        kx, ky, kz = kg[0][:, ps], kg[1][:, ps], kg[2][:, ps]
        qn = jnp.sum(qx * qx + qy * qy + qz * qz, axis=-1, keepdims=True)
        kn = jnp.sum(kx * kx + ky * ky + kz * kz, axis=-1, keepdims=True)
        cross = _dot_t_f32(qx, kx) + _dot_t_f32(qy, ky) + _dot_t_f32(qz, kz)
        pt_att = -0.5 * (qn + kn.T - 2.0 * cross)     # -1/2 sum_p ||qp - kp||^2

        logits = att + bz_ref[0, h] + pt_att + mb
        m = jnp.max(logits, axis=-1, keepdims=True)
        e = jnp.exp(logits - m)
        a = e * pl.reciprocal(jnp.sum(e, axis=-1, keepdims=True), approx=True)
        a_list.append(a)

        o_list.append(_bf16_dot(a, v[:, cs]))         # (N, C)
        ox_list.append(_bf16_dot(a, vg[0][:, vs]))    # (N, Pv) global value points
        oy_list.append(_bf16_dot(a, vg[1][:, vs]))
        oz_list.append(_bf16_dot(a, vg[2][:, vs]))

    o = jnp.concatenate(o_list, axis=-1)              # (N, H*C)
    ogx = jnp.concatenate(ox_list, axis=-1)           # (N, H*Pv)
    ogy = jnp.concatenate(oy_list, axis=-1)
    ogz = jnp.concatenate(oz_list, axis=-1)

    # o_pair: one batched (per-residue) MXU contraction instead of the
    # (N, N, C_Z) broadcast temp: (N, H, N) x (N, N, C_Z) -> (N, H, C_Z)
    A = jnp.stack(a_list, axis=1).astype(jnp.bfloat16)
    op3 = lax.dot_general(A, zz, (((2,), (1,)), ((0,), (0,))),
                          preferred_element_type=jnp.float32)
    o_pair = op3.reshape(op3.shape[0], N_HEAD * C_Z)  # (N, H*C_Z)

    # value points back into the local frame: R^T (x - t), plus norms
    dx, dy, dz = ogx - t[0], ogy - t[1], ogz - t[2]
    lx = r[0] * dx + r[3] * dy + r[6] * dz
    ly = r[1] * dx + r[4] * dy + r[7] * dz
    lz = r[2] * dx + r[5] * dy + r[8] * dz
    nrm = jnp.sqrt(lx * lx + ly * ly + lz * lz + EPS)

    # concat slab built in VMEM, fused output projection + residual add
    cat = jnp.concatenate([o, lx, ly, lz, nrm, o_pair], axis=-1)   # (N, 256)
    out_ref[0] = s + _bf16_dot(cat, wo_ref[...]) + bo_ref[...]


def pallas_ipa_fused(s, rt, c):
    Bq, N, Cs = s.shape
    H = c['bz'].shape[1]
    cz = c['z_bf16'].shape[-1]

    def b3(i):
        return (i, 0, 0)

    def b4(i):
        return (i, 0, 0, 0)

    def c2(i):
        return (0, 0)

    return pl.pallas_call(
        _ipa_fused_kernel,
        out_shape=jax.ShapeDtypeStruct((Bq, N, Cs), jnp.float32),
        grid=(Bq,),
        in_specs=[
            pl.BlockSpec((1, N, Cs), b3),             # s
            pl.BlockSpec((Cs, D_PROJ), c2),           # fused projection weight
            pl.BlockSpec((1, D_PROJ), c2),            # fused projection bias
            pl.BlockSpec((1, HPQ), c2),               # per-head point scale
            pl.BlockSpec((1, H, N, N), b4),           # pair bias (pre-scaled)
            pl.BlockSpec((1, 1, N), b3),              # mask bias
            pl.BlockSpec((1, N, N, cz), b4),          # pair repr (bf16)
            pl.BlockSpec((1, N, 12), b3),             # rigid frames [R | t]
            pl.BlockSpec((D_CAT, Cs), c2),            # output projection weight
            pl.BlockSpec((1, Cs), c2),                # output projection bias
        ],
        out_specs=pl.BlockSpec((1, N, Cs), b3),
        compiler_params=pltpu.CompilerParams(
            dimension_semantics=("parallel",),
            vmem_limit_bytes=VMEM_LIMIT),
    )(s, c['wf'], c['bf'], c['ptsc'], c['bz'], c['mask_bias'],
      c['z_bf16'], rt, c['w_out'], c['b_out'])


# ======================= fused per-block epilogue =======================
# LayerNorm -> 3-layer ReLU transition (+residual) -> LayerNorm -> bb update.

def _epilogue_kernel(s_ref, g1_ref, c1_ref,
                     w1_ref, v1_ref, w2_ref, v2_ref, w3_ref, v3_ref,
                     g2_ref, c2_ref, wb_ref, vb_ref,
                     s_out_ref, upd_ref):
    def ln(x, g, b):
        mu = jnp.mean(x, axis=-1, keepdims=True)
        var = jnp.mean((x - mu) ** 2, axis=-1, keepdims=True)
        return (x - mu) * lax.rsqrt(var + 1e-5) * g + b

    x = ln(s_ref[...], g1_ref[...], c1_ref[...])
    h = jnp.maximum(_bf16_dot(x, w1_ref[...]) + v1_ref[...], 0.0)
    h = jnp.maximum(_bf16_dot(h, w2_ref[...]) + v2_ref[...], 0.0)
    h = _bf16_dot(h, w3_ref[...]) + v3_ref[...]
    y = ln(x + h, g2_ref[...], c2_ref[...])
    s_out_ref[...] = y
    upd_ref[...] = _bf16_dot(y, wb_ref[...]) + vb_ref[...]


def pallas_block_epilogue(s, params, max_rows=256):
    lead = s.shape[:-1]
    C = s.shape[-1]
    s2 = s.reshape(-1, C)
    M = s2.shape[0]
    w1, b1, w2, b2, w3, b3 = params['transition']
    F = params['w_bb'].shape[-1]
    tm = M if (M <= max_rows or M % max_rows != 0) else max_rows

    def row2(shape):
        return pl.BlockSpec(shape, lambda i: (i, 0))

    def cst2(shape):
        return pl.BlockSpec(shape, lambda i: (0, 0))

    s_new, upd = pl.pallas_call(
        _epilogue_kernel,
        out_shape=(jax.ShapeDtypeStruct((M, C), jnp.float32),
                   jax.ShapeDtypeStruct((M, F), jnp.float32)),
        grid=(M // tm,),
        in_specs=[row2((tm, C)),
                  cst2((1, C)), cst2((1, C)),
                  cst2((C, C)), cst2((1, C)),
                  cst2((C, C)), cst2((1, C)),
                  cst2((C, C)), cst2((1, C)),
                  cst2((1, C)), cst2((1, C)),
                  cst2((C, F)), cst2((1, F))],
        out_specs=(row2((tm, C)), row2((tm, F))),
        compiler_params=pltpu.CompilerParams(
            dimension_semantics=("parallel",),
            vmem_limit_bytes=VMEM_LIMIT),
    )(s2,
      params['ln_ipa_g'].reshape(1, C), params['ln_ipa_b'].reshape(1, C),
      w1, b1.reshape(1, C), w2, b2.reshape(1, C), w3, b3.reshape(1, C),
      params['ln_tr_g'].reshape(1, C), params['ln_tr_b'].reshape(1, C),
      params['w_bb'], params['b_bb'].reshape(1, F))
    return s_new.reshape(lead + (C,)), upd.reshape(lead + (F,))


# ======================= plain-JAX glue =======================

def layer_norm(x, g, b, eps=1e-5):
    mu = jnp.mean(x, axis=-1, keepdims=True)
    var = jnp.mean((x - mu) ** 2, axis=-1, keepdims=True)
    return (x - mu) * jax.lax.rsqrt(var + eps) * g + b


def quat_normalize(q):
    return q / jnp.sqrt(jnp.sum(q * q, axis=-1, keepdims=True) + EPS)


def quat_to_rot(q):
    q = quat_normalize(q)
    w, x, y, z = (q[..., 0], q[..., 1], q[..., 2], q[..., 3])
    r00 = 1 - 2 * (y * y + z * z)
    r01 = 2 * (x * y - w * z)
    r02 = 2 * (x * z + w * y)
    r10 = 2 * (x * y + w * z)
    r11 = 1 - 2 * (x * x + z * z)
    r12 = 2 * (y * z - w * x)
    r20 = 2 * (x * z - w * y)
    r21 = 2 * (y * z + w * x)
    r22 = 1 - 2 * (x * x + y * y)
    return jnp.stack([jnp.stack([r00, r01, r02], -1),
                      jnp.stack([r10, r11, r12], -1),
                      jnp.stack([r20, r21, r22], -1)], -2)


def quat_multiply(q1, q2):
    w1, x1, y1, z1 = (q1[..., 0], q1[..., 1], q1[..., 2], q1[..., 3])
    w2, x2, y2, z2 = (q2[..., 0], q2[..., 1], q2[..., 2], q2[..., 3])
    return jnp.stack([
        w1 * w2 - x1 * x2 - y1 * y2 - z1 * z2,
        w1 * x2 + x1 * w2 + y1 * z2 - z1 * y2,
        w1 * y2 - x1 * z2 + y1 * w2 + z1 * x2,
        w1 * z2 + x1 * y2 - y1 * x2 + z1 * w2], axis=-1)


def reorder_wout_rows(w_out):
    """Permute output-projection rows from the reference concat layout
    [o | o_pt(h,p,xyz) | o_pt_norm(h,p) | o_pair(h,c)] to the in-kernel layout
    [o | o_pt_x(h,p) | o_pt_y | o_pt_z | o_pt_norm | o_pair]."""
    idx = list(range(HC))
    for comp in range(3):
        for h in range(N_HEAD):
            for p in range(NO_V_PTS):
                idx.append(HC + h * NO_V_PTS * 3 + p * 3 + comp)
    idx += list(range(HC + 3 * HPV, D_CAT))
    return w_out[jnp.asarray(idx)]


def precompute_ipa_constants(p, z, mask):
    """Everything IPA needs that does not change across refinement blocks."""
    scalar_scale = math.sqrt(1.0 / 3.0) / math.sqrt(C_HID)

    def planes(w, b, P):   # (C_S, H*P*3) -> xyz-plane layout (C_S, 3*H*P)
        wp = w.reshape(C_S, N_HEAD, P, 3).transpose(0, 3, 1, 2)
        bp = b.reshape(N_HEAD, P, 3).transpose(2, 0, 1)
        return wp.reshape(C_S, 3 * N_HEAD * P), bp.reshape(3 * N_HEAD * P)

    wqp, bqp = planes(p['w_qp'], p['b_qp'], NO_QK_PTS)
    wkp, bkp = planes(p['w_kp'], p['b_kp'], NO_QK_PTS)
    wvp, bvp = planes(p['w_vp'], p['b_vp'], NO_V_PTS)

    # single fused projection (AlphaFold scalar q-scale folded into q columns)
    wf = jnp.concatenate([p['w_q'] * scalar_scale, p['w_k'], p['w_v'],
                          wqp, wkp, wvp], axis=1)
    bf = jnp.concatenate([p['b_q'] * scalar_scale, p['b_k'], p['b_v'],
                          bqp, bkp, bvp], axis=0).reshape(1, D_PROJ)

    head_w = jax.nn.softplus(p['head_weights'])
    pt_scale = head_w * math.sqrt(1.0 / 3.0) * math.sqrt(2.0 / (9.0 * NO_QK_PTS))
    ptsc = jnp.repeat(jnp.sqrt(pt_scale), NO_QK_PTS).reshape(1, HPQ)

    # pair bias hoisted out of the block loop (depends only on z); pre-scaled
    bz = pallas_linear(z, p['w_b'], p['b_b'])                 # [B,N,N,H]
    bz = (bz * math.sqrt(1.0 / 3.0)).transpose(0, 3, 1, 2)    # [B,H,N,N]

    mask_bias = ((mask - 1.0) * 1e9)[:, None, :]              # [B,1,N]

    return {
        'wf': wf, 'bf': bf, 'ptsc': ptsc, 'bz': bz, 'mask_bias': mask_bias,
        'z_bf16': z.astype(jnp.bfloat16),
        'w_out': reorder_wout_rows(p['w_out']),
        'b_out': p['b_out'].reshape(1, C_S),
    }


def af_refine_structure_module(params, s, z, aatype, quat_encoder, mask):
    Bq, N, _ = s.shape
    s = layer_norm(s, params['ln_s_g'], params['ln_s_b'])
    z = layer_norm(z, params['ln_z_g'], params['ln_z_b'])
    s = pallas_linear(s, params['w_in'], params['b_in'])

    ipa_c = precompute_ipa_constants(params['ipa'], z, mask)

    quat = quat_normalize(quat_encoder[..., :4])
    trans = quat_encoder[..., 4:]
    lit_pos = params['atom14_local_pos'][aatype]   # [B,N,14,3]

    frames_list, pos_list, states = [], [], []
    for _ in range(NO_BLOCKS):
        R = quat_to_rot(quat)
        rt = jnp.concatenate([R.reshape(Bq, N, 9), trans], axis=-1)   # [B,N,12]

        # fused IPA (projection + attention + output projection + residual)
        s = pallas_ipa_fused(s, rt, ipa_c)
        # fused epilogue: LN -> transition (+res) -> LN -> backbone update
        s, upd = pallas_block_epilogue(s, params)                     # upd: [B,N,6]

        q_upd = jnp.concatenate(
            [jnp.ones(upd.shape[:-1] + (1,), upd.dtype), upd[..., :3]], axis=-1)
        t_upd = upd[..., 3:]
        quat = quat_normalize(quat_multiply(quat, q_upd))
        trans = trans + jnp.einsum('bnij,bnj->bni', R, t_upd)

        R_new = quat_to_rot(quat)
        frame = jnp.zeros(quat.shape[:-1] + (4, 4), jnp.float32)
        frame = frame.at[..., :3, :3].set(R_new)
        frame = frame.at[..., :3, 3].set(trans)
        frame = frame.at[..., 3, 3].set(1.0)

        # TODO(synk): AFRefineStructureModule's torsion-angle resnet and the
        # torsion-frame -> atom14 construction (residue-constant tables) are not
        # reproduced; atom14 positions are built by applying the backbone frame
        # to a learned per-aatype atom14 template instead.
        pos = jnp.einsum('bnij,bnaj->bnai', R_new, lit_pos) + trans[:, :, None, :]
        pos = pos * mask[..., None, None]

        frames_list.append(frame)
        pos_list.append(pos)
        states.append(s)

    return {
        'frames': jnp.stack(frames_list, axis=0),      # [blocks,B,N,4,4]
        'positions': jnp.stack(pos_list, axis=0),      # [blocks,B,N,14,3]
        'states': jnp.stack(states, axis=0),
        'single': s,
    }


def atom14_to_atom37(atom14, feats):
    idx = feats['residx_atom37_to_atom14']     # [B,N,37] int
    mask37 = feats['atom37_atom_exists']       # [B,N,37]
    n_extra = atom14.ndim - (idx.ndim + 1)
    idx_b = jnp.broadcast_to(idx, atom14.shape[:n_extra] + idx.shape)
    mask_b = jnp.broadcast_to(mask37, atom14.shape[:n_extra] + mask37.shape)
    atom37 = jnp.take_along_axis(atom14, idx_b[..., None], axis=-2)
    return atom37 * mask_b[..., None]


class RefineModuleJAX:
    """JAX/Pallas port of RefineModule.forward."""

    def __init__(self, config, params):
        self.refine_module_type = config['type']
        if self.refine_module_type != 'baseline':
            raise ValueError("only 'baseline' is supported")
        self.params = params

    def __call__(self, outputs, feats):
        sm_output = outputs['sm']
        s = outputs['single']
        z = outputs['pair']
        aatype = sm_output['aatype']
        mask = sm_output['mask']
        quat_encoder = sm_output['quat_encoder']
        outputs['rm'] = af_refine_structure_module(
            self.params, s, z, aatype, quat_encoder, mask)
        outputs['final_atom_positions_rm'] = atom14_to_atom37(
            outputs['rm']['positions'], feats)
        outputs['final_atom_mask'] = feats['atom37_atom_exists']
        outputs['pred_frame_tensor'] = outputs['rm']['frames'][-1]
        return outputs


# ======================= deterministic parameter init =======================

def init_params(key):
    keys = list(jax.random.split(key, 32))
    it = iter(keys)

    def w(shape, scale=0.1):
        return jax.random.normal(next(it), shape, jnp.float32) * scale

    H, C = N_HEAD, C_HID
    ipa = {
        'w_q': w((C_S, H * C)), 'b_q': jnp.zeros((H * C,), jnp.float32),
        'w_k': w((C_S, H * C)), 'b_k': jnp.zeros((H * C,), jnp.float32),
        'w_v': w((C_S, H * C)), 'b_v': jnp.zeros((H * C,), jnp.float32),
        'w_qp': w((C_S, H * NO_QK_PTS * 3)),
        'b_qp': jnp.zeros((H * NO_QK_PTS * 3,), jnp.float32),
        'w_kp': w((C_S, H * NO_QK_PTS * 3)),
        'b_kp': jnp.zeros((H * NO_QK_PTS * 3,), jnp.float32),
        'w_vp': w((C_S, H * NO_V_PTS * 3)),
        'b_vp': jnp.zeros((H * NO_V_PTS * 3,), jnp.float32),
        'w_b': w((C_Z, H)), 'b_b': jnp.zeros((H,), jnp.float32),
        'head_weights': jnp.zeros((H,), jnp.float32),
        'w_out': w((H * (C + C_Z + NO_V_PTS * 4), C_S)),
        'b_out': jnp.zeros((C_S,), jnp.float32),
    }
    params = {
        'ln_s_g': jnp.ones((C_S,), jnp.float32), 'ln_s_b': jnp.zeros((C_S,), jnp.float32),
        'ln_z_g': jnp.ones((C_Z,), jnp.float32), 'ln_z_b': jnp.zeros((C_Z,), jnp.float32),
        'w_in': w((C_S, C_S)), 'b_in': jnp.zeros((C_S,), jnp.float32),
        'ipa': ipa,
        'ln_ipa_g': jnp.ones((C_S,), jnp.float32), 'ln_ipa_b': jnp.zeros((C_S,), jnp.float32),
        'transition': (w((C_S, C_S)), jnp.zeros((C_S,), jnp.float32),
                       w((C_S, C_S)), jnp.zeros((C_S,), jnp.float32),
                       w((C_S, C_S)), jnp.zeros((C_S,), jnp.float32)),
        'ln_tr_g': jnp.ones((C_S,), jnp.float32), 'ln_tr_b': jnp.zeros((C_S,), jnp.float32),
        'w_bb': w((C_S, 6)), 'b_bb': jnp.zeros((6,), jnp.float32),
        'atom14_local_pos': w((N_AATYPE, 14, 3), scale=1.0),
    }
    return params


if __name__ == "__main__":
    key = jax.random.PRNGKey(0)
    k_params, k_s, k_z, k_aa, k_quat, k_trans, k_idx, k_ex = jax.random.split(key, 8)
    params = init_params(k_params)

    s = jax.random.normal(k_s, (B, N_RES, C_S), jnp.float32)
    z = jax.random.normal(k_z, (B, N_RES, N_RES, C_Z), jnp.float32)
    aatype = jax.random.randint(k_aa, (B, N_RES), 0, N_AATYPE)
    mask = jnp.ones((B, N_RES), jnp.float32)
    quat0 = quat_normalize(jax.random.normal(k_quat, (B, N_RES, 4), jnp.float32))
    trans0 = jax.random.normal(k_trans, (B, N_RES, 3), jnp.float32)
    quat_encoder = jnp.concatenate([quat0, trans0], axis=-1)

    outputs = {
        'sm': {'aatype': aatype, 'mask': mask, 'quat_encoder': quat_encoder},
        'single': s,
        'pair': z,
    }
    feats = {
        'residx_atom37_to_atom14': jax.random.randint(k_idx, (B, N_RES, 37), 0, 14),
        'atom37_atom_exists': jax.random.bernoulli(
            k_ex, 0.8, (B, N_RES, 37)).astype(jnp.float32),
    }

    module = RefineModuleJAX({'type': 'baseline'}, params)
    out = module(dict(outputs), feats)

    jax.block_until_ready(out['final_atom_positions_rm'])
    jax.block_until_ready(out['pred_frame_tensor'])
    jax.block_until_ready(out['rm']['single'])

    assert out['final_atom_positions_rm'].shape == (NO_BLOCKS, B, N_RES, 37, 3)
    assert out['pred_frame_tensor'].shape == (B, N_RES, 4, 4)
    print("KERNEL_OK")
</pallas_src>

<mosaic_0001>
module attributes {stable_mosaic.version = 11 : i64} {
  func.func @_linear_kernel(%arg0: i32, %arg1: memref<16x32xf32, #tpu.memory_space<vmem>>, %arg2: memref<32x32xf32, #tpu.memory_space<vmem>>, %arg3: memref<1x32xf32, #tpu.memory_space<vmem>>, %arg4: memref<16x32xf32, #tpu.memory_space<vmem>>) attributes {dimension_semantics = [#tpu.dimension_semantics<parallel>], iteration_bounds = array<i64: 1>, scalar_prefetch = 0 : i64, scratch_operands = 0 : i64, tpu.core_type = #tpu.core_type<tc>, window_params = [{transform_indices = @transform_0, window_bounds = array<i64: 16, 32>}, {pipeline_mode = #tpu.pipeline_mode<synchronous>, transform_indices = @transform_1, window_bounds = array<i64: 32, 32>}, {pipeline_mode = #tpu.pipeline_mode<synchronous>, transform_indices = @transform_2, window_bounds = array<i64: 1, 32>}, {transform_indices = @transform_3, window_bounds = array<i64: 16, 32>}]} {
    %c0 = arith.constant 0 : index
    %c0_0 = arith.constant 0 : index
    %0 = vector.load %arg1[%c0, %c0_0] : memref<16x32xf32, #tpu.memory_space<vmem>>, vector<16x32xf32>
    %c0_1 = arith.constant 0 : index
    %c0_2 = arith.constant 0 : index
    %1 = vector.load %arg2[%c0_1, %c0_2] : memref<32x32xf32, #tpu.memory_space<vmem>>, vector<32x32xf32>
    %2 = arith.truncf %0 : vector<16x32xf32> to vector<16x32xbf16>
    %3 = arith.truncf %1 : vector<32x32xf32> to vector<32x32xbf16>
    %cst = arith.constant dense<0.000000e+00> : vector<16x32xf32>
    %4 = tpu.matmul %2, %3, %cst {dimension_numbers = #tpu.dot_dimension_numbers<[1], [0], [0], [1], [0, 0, 1, 1], [], []>} : vector<16x32xbf16>, vector<32x32xbf16>, vector<16x32xf32> -> vector<16x32xf32>
    %c0_3 = arith.constant 0 : index
    %c0_4 = arith.constant 0 : index
    %5 = vector.load %arg3[%c0_3, %c0_4] : memref<1x32xf32, #tpu.memory_space<vmem>>, vector<1x32xf32>
    %6 = vector.broadcast %5 : vector<1x32xf32> to vector<16x32xf32>
    %7 = arith.addf %4, %6 : vector<16x32xf32>
    %c0_5 = arith.constant 0 : index
    %c0_6 = arith.constant 0 : index
    %8 = vector.load %arg4[%c0_5, %c0_6] : memref<16x32xf32, #tpu.memory_space<vmem>>, vector<16x32xf32>
    tpu.vector_store %arg4[%c0_5, %c0_6], %7 {strides = array<i32>} : memref<16x32xf32, #tpu.memory_space<vmem>>, vector<16x32xf32>,
    return
  }
  func.func @transform_0(%arg0: i32) -> (i32, i32) {
    %c0_i32 = arith.constant 0 : i32
    %c0_i32_0 = arith.constant 0 : i32
    return %arg0, %c0_i32 : i32, i32
  }
  func.func @transform_1(%arg0: i32) -> (i32, i32) {
    %c0_i32 = arith.constant 0 : i32
    %c0_i32_0 = arith.constant 0 : i32
    %c0_i32_1 = arith.constant 0 : i32
    return %c0_i32, %c0_i32_0 : i32, i32
  }
  func.func @transform_2(%arg0: i32) -> (i32, i32) {
    %c0_i32 = arith.constant 0 : i32
    %c0_i32_0 = arith.constant 0 : i32
    %c0_i32_1 = arith.constant 0 : i32
    return %c0_i32, %c0_i32_0 : i32, i32
  }
  func.func @transform_3(%arg0: i32) -> (i32, i32) {
    %c0_i32 = arith.constant 0 : i32
    %c0_i32_0 = arith.constant 0 : i32
    return %arg0, %c0_i32 : i32, i32
  }
}

</mosaic_0001>

<llo_original>
// kernel: tpu_custom_call.1
$region0: #{tpu_custom_call.1}
  #allocation0 [shape = 'u32[]', space=smem, size = 0x4, offset = 0x4, fixed_abs, tag = 'smem constant byte address 0x4 - core index']
  #allocation1 [shape = 'u32[144,128]{1,0:T(1,128)}', space=vmem, size = 0x12000, scoped, tag = 'internal scratch']
  %s0 = inlined_call_operand.hbm [shape: f32[16,32], index: 0, kind: input, shape index: {}]
  %s1 = inlined_call_operand.hbm [shape: f32[32,32], index: 1, kind: input, shape index: {}]
  %s2 = inlined_call_operand.vmem [shape: f32[1,32], index: 2, kind: input, shape index: {}]
  %s3 = inlined_call_operand.hbm [shape: f32[16,32], index: 3, kind: output, shape index: {}]
  %s4 = sld [smem:[#allocation0]]
  $region30: #{tpu_custom_call.1} parent=0
    _
  %s6 = ssub.s32 1, %s4
  %s7 = scalar_select 0, %s6, %s4
  $region1: #{tpu_custom_call.1} parent=0
    #allocation2 [shape = 'u8[8192]{0}', space=vmem, size = 0x2000, scoped, tag = 'input window, operand 0, single buffered']
    #allocation3 [shape = 's32[1]{0}', space=sflag, size = 0x4, scoped, tag = 'scoped memory for tpu_custom_call.1']
    #allocation4 [shape = 's32[1]{0}', space=sflag, size = 0x4, scoped, tag = 'scoped memory for tpu_custom_call.1']
    #allocation5 [shape = 'u8[16384]{0}', space=vmem, size = 0x4000, scoped, tag = 'input window, operand 1, single buffered']
    #allocation6 [shape = 's32[1]{0}', space=sflag, size = 0x4, scoped, tag = 'scoped memory for tpu_custom_call.1']
    #allocation7 [shape = 'u8[8192]{0}', space=vmem, size = 0x2000, scoped, tag = 'output window, operand 0, single buffered']
    %8 = vsyncpa [#allocation3], 0
    %9 = vsyncpa [#allocation6], 0
    %10 = vsyncpa [#allocation4], 0
    // Predicated region
    $region2: #{tpu_custom_call.1} parent=1 // pred_check
      _
    $region3: #{tpu_custom_call.1} parent=1 // pred_check_branch
      %12 = sbr.rel (0) target = $region5
    $region4: #{tpu_custom_call.1} parent=1 // pred_region
      %s14 = ssub.s32 256, 256
      %15 = vsyncadd [#allocation3], %s14
      %s16 = sshll.u32 [#allocation2], 4
      %s17 = int_to_ptr.vmem [resolvable:$true] %s16
      %22 = dma.hbm_to_vmem [thread:$0]  %s0, 256, %s17, [#allocation3], 128, 128, 8
    $region5: #{tpu_custom_call.1} parent=1 // pred_fallthru
      _
    // Predicated region
    $region6: #{tpu_custom_call.1} parent=1 // pred_check
      _
    $region7: #{tpu_custom_call.1} parent=1 // pred_check_branch
      %24 = sbr.rel (0) target = $region9
    $region8: #{tpu_custom_call.1} parent=1 // pred_region
      %s26 = ssub.s32 512, 512
      %27 = vsyncadd [#allocation6], %s26
      %s28 = sshll.u32 [#allocation5], 4
      %s29 = int_to_ptr.vmem [resolvable:$true] %s28
      %34 = dma.hbm_to_vmem [thread:$0]  %s1, 512, %s29, [#allocation6], 128, 128, 8
    $region9: #{tpu_custom_call.1} parent=1 // pred_fallthru
      _
    // Predicated region
    $region10: #{tpu_custom_call.1} parent=1 // pred_check
      _
    $region11: #{tpu_custom_call.1} parent=1 // pred_check_branch
      %36 = sbr.rel (0) target = $region13
    $region12: #{tpu_custom_call.1} parent=1 // pred_region
      _
    $region13: #{tpu_custom_call.1} parent=1 // pred_fallthru
      _
    // Predicated region
    $region14: #{tpu_custom_call.1} parent=1 // pred_check
      _
    $region15: #{tpu_custom_call.1} parent=1 // pred_check_branch
      %38 = sbr.rel (0) target = $region17
    $region16: #{tpu_custom_call.1} parent=1 // pred_region
      %39 = dma.done [#allocation3], 256
    $region17: #{tpu_custom_call.1} parent=1 // pred_fallthru
      _
    // Predicated region
    $region18: #{tpu_custom_call.1} parent=1 // pred_check
      _
    $region19: #{tpu_custom_call.1} parent=1 // pred_check_branch
      %41 = sbr.rel (0) target = $region21
    $region20: #{tpu_custom_call.1} parent=1 // pred_region
      %42 = dma.done [#allocation6], 512
    $region21: #{tpu_custom_call.1} parent=1 // pred_fallthru
      _
    %v44 = vld [vmem:[#allocation2] sm:$0xff]
    %v45 = vld [vmem:[#allocation2 + $0x8] sm:$0xff]
    %v46 = vld [vmem:[#allocation5] sm:$0xff]
    %v47 = vld [vmem:[#allocation5 + $0x8] sm:$0xff]
    %v48 = vld [vmem:[#allocation5 + $0x10] sm:$0xff]
    %v49 = vld [vmem:[#allocation5 + $0x18] sm:$0xff]
    %v50 = vpack.c.bf16 %v45, %v44
    %v51 = vpack.c.bf16 %v47, %v46
    %v52 = vpack.c.bf16 %v49, %v48
    %v53 = vld [vmem:[%s2] sm:$0x1]
    %v55 = vlaneseq
    %v56 = vshrl.u32 %v55, 7
    %v57 = vsub.s32 0, %v56
    %v58 = vrot.slane %v53, %v57
    %vm60 = vcmask 261120
    %v62 = vsel %vm60, %v50, 0
    %64 = vmatprep.subr.bf16.mxu0 0
    %65 = vmatpush1.bf16.msra.mxu0 %v51
    %66 = vmatprep.subr.bf16.mxu0 0
    %67 = vmatpush1.bf16.msra.mxu0 %v52
    %68 = vmatprep.subr.bf16.mxu0 0
    %69 = vmatpush1.bf16.msra.mxu0 0
    %70 = vmatprep.subr.bf16.mxu0 0
    %71 = vmatpush1.bf16.msra.mxu0 0
    %72 = vmatprep.subr.bf16.mxu0 0
    %73 = vmatpush1.bf16.msra.mxu0 0
    %74 = vmatprep.subr.bf16.mxu0 0
    %75 = vmatpush1.bf16.msra.mxu0 0
    %76 = vmatprep.subr.bf16.mxu0 0
    %77 = vmatpush1.bf16.msra.mxu0 0
    %78 = vmatprep.subr.bf16.mxu0 0
    %79 = vmatpush1.bf16.msra.mxu0 0
    %80 = vmatprep.subr.bf16.mxu0 0
    %81 = vmatpush1.bf16.msra.mxu0 0
    %82 = vmatprep.subr.bf16.mxu0 0
    %83 = vmatpush1.bf16.msra.mxu0 0
    %84 = vmatprep.subr.bf16.mxu0 0
    %85 = vmatpush1.bf16.msra.mxu0 0
    %86 = vmatprep.subr.bf16.mxu0 0
    %87 = vmatpush1.bf16.msra.mxu0 0
    %88 = vmatprep.subr.bf16.mxu0 0
    %89 = vmatpush1.bf16.msra.mxu0 0
    %90 = vmatprep.subr.bf16.mxu0 0
    %91 = vmatpush1.bf16.msra.mxu0 0
    %92 = vmatprep.subr.bf16.mxu0 0
    %93 = vmatpush1.bf16.msra.mxu0 0
    %94 = vmatprep.subr.bf16.mxu0 0
    %95 = vmatpush1.bf16.msra.mxu0 0
    %96 = vmatprep.mubr.bf16.mxu0 0
    %97 = vmatmul.mubr.bf16.gmra.mrb[0].mxu0 %v62
    %v98 = vpop.f32.mrb[0].mxu0
    %v99 = vadd.f32 %v58, %v98
    %v100 = vpop.f32.mrb[0].mxu0
    %v101 = vpop.f32.mrb[0].mxu0
    %v102 = vadd.f32 %v58, %v101
    %v103 = vpop.f32.mrb[0].mxu0
    %104 = vdwg.mxu0
    %105 = vst.msk [vmem:[#allocation7] sm:$0xff] %vm60, %v99
    %106 = vst.msk [vmem:[#allocation7 + $0x8] sm:$0xff] %vm60, %v102
    // Predicated region
    $region22: #{tpu_custom_call.1} parent=1 // pred_check
      _
    $region23: #{tpu_custom_call.1} parent=1 // pred_check_branch
      %108 = sbr.rel (0) target = $region25
    $region24: #{tpu_custom_call.1} parent=1 // pred_region
      %s110 = ssub.s32 256, 256
      %111 = vsyncadd [#allocation4], %s110
      %s112 = sshll.u32 [#allocation7], 4
      %s113 = int_to_ptr.vmem [resolvable:$true] %s112
      %118 = dma.vmem_to_hbm [thread:$0]  %s113, 256, %s3, [#allocation4], 128, 128, 8
    $region25: #{tpu_custom_call.1} parent=1 // pred_fallthru
      _
    // Predicated region
    $region26: #{tpu_custom_call.1} parent=1 // pred_check
      _
    $region27: #{tpu_custom_call.1} parent=1 // pred_check_branch
      %120 = sbr.rel (0) target = $region29
    $region28: #{tpu_custom_call.1} parent=1 // pred_region
      %121 = dma.done [#allocation4], 256
    $region29: #{tpu_custom_call.1} parent=1 // pred_fallthru
      _
    %122 = vsyncpa [#allocation3], 1
    %123 = vsyncpa [#allocation6], 1
    %124 = vsyncpa [#allocation4], 1

</llo_original>
